<compile_context>
chip_gen: v6e
topology: v6e:2x2x1
jax: 0.10.0
libtpu: 0.0.40
codegen_flags: <defaults>
</compile_context>

<pallas_src>
import math

import numpy as np
import jax
import jax.numpy as jnp
from jax.experimental import pallas as pl
from jax.experimental.pallas import tpu as pltpu

_TARGET_TILE_BYTES = 4 << 20   # ~4 MiB row tiles: near HBM roofline on v5e/v6e/v7x
_VMEM_LIMIT_BYTES = 48 << 20   # > v5e's 16 MiB scoped default, < v7x's 64 MiB physical


def _copy_kernel(x_ref, o_ref):
    # ContentLoss.forward is the identity: pass the VMEM tile straight through.
    o_ref[...] = x_ref[...]


def _choose_lane_dense_cols(total: int) -> int:
    """Largest convenient multiple of 128 that divides the element count."""
    for c in (4096, 2048, 1024, 512, 256, 128):
        if total % c == 0:
            return c
    return 0


def _tiled_identity(x2d: jax.Array) -> jax.Array:
    """Lane-dense, double-buffered pass-through of a (rows, cols) array."""
    rows, cols = x2d.shape
    itemsize = x2d.dtype.itemsize
    bytes_per_row = cols * itemsize

    # Rows per tile: ~4 MiB, multiple of 8 sublanes; full extent if small.
    tile_r = max(8, (_TARGET_TILE_BYTES // bytes_per_row) // 8 * 8)
    if tile_r >= rows:
        tile_r = rows  # full-extent block dim is always legal
    grid_r = pl.cdiv(rows, tile_r)

    total_bytes = rows * cols * itemsize

    return pl.pallas_call(
        _copy_kernel,
        out_shape=jax.ShapeDtypeStruct((rows, cols), x2d.dtype),
        grid=(grid_r,),
        # index_map returns BLOCK indices: block i of the rows axis.
        in_specs=[pl.BlockSpec((tile_r, cols), lambda i: (i, 0))],
        out_specs=pl.BlockSpec((tile_r, cols), lambda i: (i, 0)),
        # Output reuses the input HBM buffer when the caller donates it.
        input_output_aliases={0: 0},
        # Pure-bandwidth hint for XLA's scheduler.
        cost_estimate=pl.CostEstimate(
            flops=0, transcendentals=0, bytes_accessed=2 * total_bytes
        ),
        compiler_params=pltpu.CompilerParams(
            # Independent tiles: lets v7x shard the copy across both TensorCores.
            dimension_semantics=("parallel",),
            vmem_limit_bytes=_VMEM_LIMIT_BYTES,
        ),
    )(x2d)


def content_loss_forward(x: jax.Array) -> jax.Array:
    """Pallas equivalent of ContentLoss.forward: returns the input unchanged.

    Production note: the cheapest correct implementation is simply `return x`;
    this keeps an explicit Pallas pass (with buffer aliasing) to express the
    forward as a kernel.
    """
    orig_shape = x.shape
    dtype = x.dtype
    total = int(math.prod(orig_shape))
    if total == 0:
        return x

    cols = _choose_lane_dense_cols(total)
    if cols != 0:
        rows = total // cols
        out2d = _tiled_identity(x.reshape(rows, cols))
        return out2d.reshape(orig_shape)

    # Fallback: element count not a multiple of 128.  Pad the flattened tensor
    # to the next multiple of 1024 (8 sublanes x 128 lanes), run the same tiled
    # lane-dense path, then slice back.  This avoids the single whole-array
    # block of the previous version, which could exceed scoped VMEM.
    flat = x.reshape(total)
    padded_total = ((total + 1023) // 1024) * 1024
    flat = jnp.pad(flat, (0, padded_total - total))
    cols = _choose_lane_dense_cols(padded_total)
    rows = padded_total // cols
    out2d = _tiled_identity(flat.reshape(rows, cols))
    return out2d.reshape(padded_total)[:total].reshape(orig_shape).astype(dtype)


if __name__ == "__main__":
    key = jax.random.PRNGKey(0)
    # Small NCHW conv-feature tensor: batch=2, channels=4, spatial=16x16.
    x = jax.random.normal(key, (2, 4, 16, 16), dtype=jnp.float32)
    x_host = np.asarray(x)  # host copy for the correctness check (x is donated below)

    # Donate x so input_output_aliases={0: 0} lets XLA reuse the input HBM
    # buffer for the output (no second N-byte allocation / materialization).
    fwd = jax.jit(content_loss_forward, donate_argnums=(0,))
    y = fwd(x)
    jax.block_until_ready(y)

    assert y.shape == x_host.shape
    assert y.dtype == jnp.float32
    assert np.array_equal(np.asarray(y), x_host)

    print("KERNEL_OK")
</pallas_src>

<mosaic_0001>
module attributes {stable_mosaic.version = 11 : i64} {
  func.func @_copy_kernel(%arg0: i32, %arg1: memref<1x2048xf32, #tpu.memory_space<vmem>>, %arg2: memref<1x2048xf32, #tpu.memory_space<vmem>>) attributes {dimension_semantics = [#tpu.dimension_semantics<parallel>], iteration_bounds = array<i64: 1>, scalar_prefetch = 0 : i64, scratch_operands = 0 : i64, tpu.core_type = #tpu.core_type<tc>, window_params = [{transform_indices = @transform_0, window_bounds = array<i64: 1, 2048>}, {transform_indices = @transform_1, window_bounds = array<i64: 1, 2048>}]} {
    %c0 = arith.constant 0 : index
    %c0_0 = arith.constant 0 : index
    %0 = vector.load %arg1[%c0, %c0_0] : memref<1x2048xf32, #tpu.memory_space<vmem>>, vector<1x2048xf32>
    %c0_1 = arith.constant 0 : index
    %c0_2 = arith.constant 0 : index
    %1 = vector.load %arg2[%c0_1, %c0_2] : memref<1x2048xf32, #tpu.memory_space<vmem>>, vector<1x2048xf32>
    tpu.vector_store %arg2[%c0_1, %c0_2], %0 {strides = array<i32>} : memref<1x2048xf32, #tpu.memory_space<vmem>>, vector<1x2048xf32>,
    return
  }
  func.func @transform_0(%arg0: i32) -> (i32, i32) {
    %c0_i32 = arith.constant 0 : i32
    %c0_i32_0 = arith.constant 0 : i32
    return %arg0, %c0_i32 : i32, i32
  }
  func.func @transform_1(%arg0: i32) -> (i32, i32) {
    %c0_i32 = arith.constant 0 : i32
    %c0_i32_0 = arith.constant 0 : i32
    return %arg0, %c0_i32 : i32, i32
  }
}

</mosaic_0001>

<llo_original>
// kernel: content_loss_forward.1
$region0: #{content_loss_forward.1}
  #allocation0 [shape = 'u32[]', space=smem, size = 0x4, offset = 0x4, fixed_abs, tag = 'smem constant byte address 0x4 - core index']
  #allocation1 [shape = 'u32[144,128]{1,0:T(1,128)}', space=vmem, size = 0x12000, scoped, tag = 'internal scratch']
  %s0 = inlined_call_operand.vmem [shape: f32[1,2048], index: 0, kind: input, shape index: {}, may-alias: {0,1}]
  %s1 = inlined_call_operand.vmem [shape: f32[1,2048], index: 1, kind: output, shape index: {}, may-alias: {0,1}]
  %s2 = sld [smem:[#allocation0]]
  $region14: #{content_loss_forward.1} parent=0
    _
  %s4 = ssub.s32 1, %s2
  %s5 = scalar_select 0, %s4, %s2
  // Predicated region
  $region2: #{content_loss_forward.1} parent=0 // pred_check
    _
  $region3: #{content_loss_forward.1} parent=0 // pred_check_branch
    %7 = sbr.rel (0) target = $region5
  $region4: #{content_loss_forward.1} parent=0 // pred_region
    _
  $region5: #{content_loss_forward.1} parent=0 // pred_fallthru
    _
  %v8 = vld [vmem:[%s0] sm:$0xff]
  %v9 = vld [vmem:[%s0 + $0x8] sm:$0xff]
  %10 = vst [vmem:[%s1] sm:$0xff] %v8
  %11 = vst [vmem:[%s1 + $0x8] sm:$0xff] %v9
  // Predicated region
  $region6: #{content_loss_forward.1} parent=0 // pred_check
    _
  $region7: #{content_loss_forward.1} parent=0 // pred_check_branch
    %13 = sbr.rel (0) target = $region9
  $region8: #{content_loss_forward.1} parent=0 // pred_region
    _
  $region9: #{content_loss_forward.1} parent=0 // pred_fallthru
    _
  // Predicated region
  $region10: #{content_loss_forward.1} parent=0 // pred_check
    _
  $region11: #{content_loss_forward.1} parent=0 // pred_check_branch
    %15 = sbr.rel (0) target = $region13
  $region12: #{content_loss_forward.1} parent=0 // pred_region
    _
  $region13: #{content_loss_forward.1} parent=0 // pred_fallthru
    _

</llo_original>
